<compile_context>
chip_gen: v7x
topology: tpu7x:2x2x1
jax: 0.10.0
libtpu: 0.0.40
codegen_flags: <defaults>
</compile_context>

<pallas_src>
import functools

import jax
import jax.numpy as jnp
from jax.experimental import pallas as pl
from jax.experimental.pallas import tpu as pltpu


def _eltwise_kernel(x1_ref, x2_ref, add_ref, sub_ref, mul_ref, div_ref, gt_ref):
    a = x1_ref[...]
    b = x2_ref[...]
    add_ref[...] = a + b
    sub_ref[...] = a - b
    mul_ref[...] = a * b
    div_ref[...] = a / (b + 1e-08)          # matches PtModule: x1 / (x2 + 1e-8)
    gt_ref[...] = (a > b).astype(gt_ref.dtype)


# ----------------------------------------------------------------------------
# Per-generation tuning
# ----------------------------------------------------------------------------
_TUNING_CACHE = None


def _tpu_tuning():
    """Returns (target_tile_elems, vmem_limit_bytes, num_cores)."""
    global _TUNING_CACHE
    if _TUNING_CACHE is not None:
        return _TUNING_CACHE
    vmem_bytes = 64 * 1024 * 1024          # conservative default (v7x per-TC VMEM)
    try:
        vmem_bytes = int(pltpu.get_tpu_info().vmem_capacity_bytes)
    except Exception:
        pass
    if vmem_bytes >= 128 * 1024 * 1024:
        # v5e / v6e: 128 MiB VMEM, single TensorCore per chip -> bigger tiles.
        _TUNING_CACHE = (1024 * 1024, 96 * 1024 * 1024, 1)
    else:
        # v7x (64 MiB per-TC VMEM, 2 TensorCores) or unknown: stay conservative.
        _TUNING_CACHE = (512 * 1024, 48 * 1024 * 1024, 2)
    return _TUNING_CACHE


def _choose_lanes(n):
    """Pick a lane width (multiple of 128) dividing n so no pad copy is needed."""
    divisors = [l for l in (4096, 2048, 1024, 512, 256, 128) if n % l == 0]
    for lanes in divisors:
        if n // lanes >= 8:                # prefer >= 8 sublane rows
            return lanes
    if divisors:
        return divisors[-1]
    return 128                             # rare fallback: requires a tail pad


def _choose_tile_rows(rows, lanes, target_tile_elems, num_cores):
    tile_rows = max(8, target_tile_elems // lanes)
    if num_cores > 1:
        # v7x: 2 TCs share ~3.2 TB/s HBM; make medium inputs split into >=
        # 2*num_cores "parallel" blocks so neither core idles.
        per_block = pl.cdiv(rows, 2 * num_cores)
        if per_block >= 32:
            tile_rows = min(tile_rows, per_block)
    if tile_rows >= rows:
        return rows                        # single full-array block
    # Multiple of 32 keeps int8 (32,128) / bf16 (16,128) stores unmasked.
    return max(32, (tile_rows // 32) * 32)


# ----------------------------------------------------------------------------
# Forward
# ----------------------------------------------------------------------------
@functools.partial(jax.jit, static_argnames=("use_bool_gt",))
def _forward(x1, x2, use_bool_gt):
    orig_shape = x1.shape
    n = x1.size
    dtype = x1.dtype

    target_tile_elems, vmem_limit, num_cores = _tpu_tuning()

    lanes = _choose_lanes(n)
    pad = (-n) % lanes                     # 0 on the common path (no copy)
    # TODO(synk): replace the rare pad path (n % 128 != 0) with an in-kernel
    # masked tail store instead of a pad copy + un-pad slices (~2x traffic there).

    def prep(x):
        xf = x.reshape(-1)
        if pad:
            xf = jnp.pad(xf, (0, pad))
        return xf.reshape(-1, lanes)

    x1p = prep(x1)
    x2p = prep(x2)
    rows = x1p.shape[0]

    tile_rows = _choose_tile_rows(rows, lanes, target_tile_elems, num_cores)
    grid = (pl.cdiv(rows, tile_rows),)
    blk = pl.BlockSpec((tile_rows, lanes), lambda i: (i, 0))

    gt_dtype = jnp.bool_ if use_bool_gt else jnp.int8
    out_shapes = (
        jax.ShapeDtypeStruct((rows, lanes), dtype),     # add
        jax.ShapeDtypeStruct((rows, lanes), dtype),     # sub
        jax.ShapeDtypeStruct((rows, lanes), dtype),     # mul
        jax.ShapeDtypeStruct((rows, lanes), dtype),     # div
        jax.ShapeDtypeStruct((rows, lanes), gt_dtype),  # gt
    )

    itemsize = jnp.dtype(dtype).itemsize
    n_elems = rows * lanes
    cost = pl.CostEstimate(
        flops=5 * n_elems,
        transcendentals=0,
        bytes_accessed=n_elems * (6 * itemsize + 1),    # 2 in + 4 out + 1B gt
    )

    outs = pl.pallas_call(
        _eltwise_kernel,
        out_shape=out_shapes,
        grid_spec=pl.GridSpec(
            grid=grid,
            in_specs=[blk, blk],
            out_specs=[blk, blk, blk, blk, blk],
        ),
        compiler_params=pltpu.CompilerParams(
            dimension_semantics=("parallel",),
            vmem_limit_bytes=vmem_limit,
        ),
        cost_estimate=cost,
    )(x1p, x2p)

    def unprep(x):
        xf = x.reshape(-1)
        if pad:
            xf = xf[:n]
        return xf.reshape(orig_shape)

    add_r = unprep(outs[0])
    sub_r = unprep(outs[1])
    mul_r = unprep(outs[2])
    div_r = unprep(outs[3])
    gt_r = unprep(outs[4])
    if not use_bool_gt:
        gt_r = gt_r.astype(jnp.bool_)      # fused under jit; fallback path only
    return add_r, sub_r, mul_r, div_r, gt_r


_GT_BOOL_OK = None                         # lazily probed: direct i1 store support


def pt_module_forward(x1, x2):
    assert x1.shape == x2.shape and x1.dtype == x2.dtype
    # Epsilon-based div assumes a floating dtype (integer inputs would be wrong).
    assert jnp.issubdtype(x1.dtype, jnp.floating)
    global _GT_BOOL_OK
    if _GT_BOOL_OK is None:
        try:
            out = _forward(x1, x2, use_bool_gt=True)
            jax.block_until_ready(out)
            _GT_BOOL_OK = True
            return out
        except Exception:
            # Mosaic rejected the direct bool store on this generation; fall back
            # to an int8 gt stream converted to bool inside the same jit.
            _GT_BOOL_OK = False
    return _forward(x1, x2, use_bool_gt=_GT_BOOL_OK)


if __name__ == "__main__":
    key = jax.random.PRNGKey(0)
    k1, k2 = jax.random.split(key)
    # NCHW-shaped inputs, matching a typical PyTorch conv-style layout.
    x1 = jax.random.normal(k1, (2, 4, 16, 16), dtype=jnp.float32)
    x2 = jax.random.normal(k2, (2, 4, 16, 16), dtype=jnp.float32)

    add_r, sub_r, mul_r, div_r, gt_r = pt_module_forward(x1, x2)
    jax.block_until_ready((add_r, sub_r, mul_r, div_r, gt_r))

    # Sanity-check against pure JAX reference (same semantics as PtModule).
    assert add_r.shape == x1.shape
    assert jnp.allclose(add_r, x1 + x2)
    assert jnp.allclose(sub_r, x1 - x2)
    assert jnp.allclose(mul_r, x1 * x2)
    assert jnp.allclose(div_r, x1 / (x2 + 1e-08))
    assert bool(jnp.all(gt_r == (x1 > x2)))
    assert gt_r.dtype == jnp.bool_
    print("KERNEL_OK")
</pallas_src>

<mosaic_0001>
module attributes {stable_mosaic.version = 11 : i64} {
  func.func @_eltwise_kernel(%arg0: i32, %arg1: memref<8x256xf32, #tpu.memory_space<vmem>>, %arg2: memref<8x256xf32, #tpu.memory_space<vmem>>, %arg3: memref<8x256xf32, #tpu.memory_space<vmem>>, %arg4: memref<8x256xf32, #tpu.memory_space<vmem>>, %arg5: memref<8x256xf32, #tpu.memory_space<vmem>>, %arg6: memref<8x256xf32, #tpu.memory_space<vmem>>, %arg7: memref<8x256xi32, #tpu.memory_space<vmem>>) attributes {dimension_semantics = [#tpu.dimension_semantics<parallel>], iteration_bounds = array<i64: 1>, scalar_prefetch = 0 : i64, scratch_operands = 0 : i64, tpu.core_type = #tpu.core_type<tc>, window_params = [{transform_indices = @transform_0, window_bounds = array<i64: 8, 256>}, {transform_indices = @transform_1, window_bounds = array<i64: 8, 256>}, {transform_indices = @transform_2, window_bounds = array<i64: 8, 256>}, {transform_indices = @transform_3, window_bounds = array<i64: 8, 256>}, {transform_indices = @transform_4, window_bounds = array<i64: 8, 256>}, {transform_indices = @transform_5, window_bounds = array<i64: 8, 256>}, {transform_indices = @transform_6, window_bounds = array<i64: 8, 256>}]} {
    %c0 = arith.constant 0 : index
    %c0_0 = arith.constant 0 : index
    %0 = vector.load %arg1[%c0, %c0_0] : memref<8x256xf32, #tpu.memory_space<vmem>>, vector<8x256xf32>
    %c0_1 = arith.constant 0 : index
    %c0_2 = arith.constant 0 : index
    %1 = vector.load %arg2[%c0_1, %c0_2] : memref<8x256xf32, #tpu.memory_space<vmem>>, vector<8x256xf32>
    %2 = arith.addf %0, %1 : vector<8x256xf32>
    %c0_3 = arith.constant 0 : index
    %c0_4 = arith.constant 0 : index
    %3 = vector.load %arg3[%c0_3, %c0_4] : memref<8x256xf32, #tpu.memory_space<vmem>>, vector<8x256xf32>
    tpu.vector_store %arg3[%c0_3, %c0_4], %2 {strides = array<i32>} : memref<8x256xf32, #tpu.memory_space<vmem>>, vector<8x256xf32>,
    %4 = arith.subf %0, %1 : vector<8x256xf32>
    %c0_5 = arith.constant 0 : index
    %c0_6 = arith.constant 0 : index
    %5 = vector.load %arg4[%c0_5, %c0_6] : memref<8x256xf32, #tpu.memory_space<vmem>>, vector<8x256xf32>
    tpu.vector_store %arg4[%c0_5, %c0_6], %4 {strides = array<i32>} : memref<8x256xf32, #tpu.memory_space<vmem>>, vector<8x256xf32>,
    %6 = arith.mulf %0, %1 : vector<8x256xf32>
    %c0_7 = arith.constant 0 : index
    %c0_8 = arith.constant 0 : index
    %7 = vector.load %arg5[%c0_7, %c0_8] : memref<8x256xf32, #tpu.memory_space<vmem>>, vector<8x256xf32>
    tpu.vector_store %arg5[%c0_7, %c0_8], %6 {strides = array<i32>} : memref<8x256xf32, #tpu.memory_space<vmem>>, vector<8x256xf32>,
    %cst = arith.constant 9.99999993E-9 : f32
    %8 = vector.broadcast %cst : f32 to vector<8x256xf32>
    %9 = arith.addf %1, %8 : vector<8x256xf32>
    %10 = arith.divf %0, %9 : vector<8x256xf32>
    %c0_9 = arith.constant 0 : index
    %c0_10 = arith.constant 0 : index
    %11 = vector.load %arg6[%c0_9, %c0_10] : memref<8x256xf32, #tpu.memory_space<vmem>>, vector<8x256xf32>
    tpu.vector_store %arg6[%c0_9, %c0_10], %10 {strides = array<i32>} : memref<8x256xf32, #tpu.memory_space<vmem>>, vector<8x256xf32>,
    %12 = arith.cmpf ogt, %0, %1 : vector<8x256xf32>
    %c0_11 = arith.constant 0 : index
    %c0_12 = arith.constant 0 : index
    %13 = vector.load %arg7[%c0_11, %c0_12] : memref<8x256xi32, #tpu.memory_space<vmem>>, vector<8x256xi32>
    %14 = arith.extui %12 : vector<8x256xi1> to vector<8x256xi32>
    %cst_13 = arith.constant dense<0> : vector<8x256xi32>
    %15 = arith.cmpi ne, %13, %cst_13 : vector<8x256xi32>
    tpu.vector_store %arg7[%c0_11, %c0_12], %14 {strides = array<i32>} : memref<8x256xi32, #tpu.memory_space<vmem>>, vector<8x256xi32>,
    return
  }
  func.func @transform_0(%arg0: i32) -> (i32, i32) {
    %c0_i32 = arith.constant 0 : i32
    %c0_i32_0 = arith.constant 0 : i32
    return %arg0, %c0_i32 : i32, i32
  }
  func.func @transform_1(%arg0: i32) -> (i32, i32) {
    %c0_i32 = arith.constant 0 : i32
    %c0_i32_0 = arith.constant 0 : i32
    return %arg0, %c0_i32 : i32, i32
  }
  func.func @transform_2(%arg0: i32) -> (i32, i32) {
    %c0_i32 = arith.constant 0 : i32
    %c0_i32_0 = arith.constant 0 : i32
    return %arg0, %c0_i32 : i32, i32
  }
  func.func @transform_3(%arg0: i32) -> (i32, i32) {
    %c0_i32 = arith.constant 0 : i32
    %c0_i32_0 = arith.constant 0 : i32
    return %arg0, %c0_i32 : i32, i32
  }
  func.func @transform_4(%arg0: i32) -> (i32, i32) {
    %c0_i32 = arith.constant 0 : i32
    %c0_i32_0 = arith.constant 0 : i32
    return %arg0, %c0_i32 : i32, i32
  }
  func.func @transform_5(%arg0: i32) -> (i32, i32) {
    %c0_i32 = arith.constant 0 : i32
    %c0_i32_0 = arith.constant 0 : i32
    return %arg0, %c0_i32 : i32, i32
  }
  func.func @transform_6(%arg0: i32) -> (i32, i32) {
    %c0_i32 = arith.constant 0 : i32
    %c0_i32_0 = arith.constant 0 : i32
    return %arg0, %c0_i32 : i32, i32
  }
}

module attributes {stable_mosaic.version = 11 : i64} {
  func.func @_eltwise_kernel(%arg0: i32, %arg1: memref<8x256xf32, #tpu.memory_space<vmem>>, %arg2: memref<8x256xf32, #tpu.memory_space<vmem>>, %arg3: memref<8x256xf32, #tpu.memory_space<vmem>>, %arg4: memref<8x256xf32, #tpu.memory_space<vmem>>, %arg5: memref<8x256xf32, #tpu.memory_space<vmem>>, %arg6: memref<8x256xf32, #tpu.memory_space<vmem>>, %arg7: memref<8x256xi8, #tpu.memory_space<vmem>>) attributes {dimension_semantics = [#tpu.dimension_semantics<parallel>], iteration_bounds = array<i64: 1>, scalar_prefetch = 0 : i64, scratch_operands = 0 : i64, tpu.core_type = #tpu.core_type<tc>, window_params = [{transform_indices = @transform_0, window_bounds = array<i64: 8, 256>}, {transform_indices = @transform_1, window_bounds = array<i64: 8, 256>}, {transform_indices = @transform_2, window_bounds = array<i64: 8, 256>}, {transform_indices = @transform_3, window_bounds = array<i64: 8, 256>}, {transform_indices = @transform_4, window_bounds = array<i64: 8, 256>}, {transform_indices = @transform_5, window_bounds = array<i64: 8, 256>}, {transform_indices = @transform_6, window_bounds = array<i64: 8, 256>}]} {
    %c0 = arith.constant 0 : index
    %c0_0 = arith.constant 0 : index
    %0 = vector.load %arg1[%c0, %c0_0] : memref<8x256xf32, #tpu.memory_space<vmem>>, vector<8x256xf32>
    %c0_1 = arith.constant 0 : index
    %c0_2 = arith.constant 0 : index
    %1 = vector.load %arg2[%c0_1, %c0_2] : memref<8x256xf32, #tpu.memory_space<vmem>>, vector<8x256xf32>
    %2 = arith.addf %0, %1 : vector<8x256xf32>
    %c0_3 = arith.constant 0 : index
    %c0_4 = arith.constant 0 : index
    %3 = vector.load %arg3[%c0_3, %c0_4] : memref<8x256xf32, #tpu.memory_space<vmem>>, vector<8x256xf32>
    tpu.vector_store %arg3[%c0_3, %c0_4], %2 {strides = array<i32>} : memref<8x256xf32, #tpu.memory_space<vmem>>, vector<8x256xf32>,
    %4 = arith.subf %0, %1 : vector<8x256xf32>
    %c0_5 = arith.constant 0 : index
    %c0_6 = arith.constant 0 : index
    %5 = vector.load %arg4[%c0_5, %c0_6] : memref<8x256xf32, #tpu.memory_space<vmem>>, vector<8x256xf32>
    tpu.vector_store %arg4[%c0_5, %c0_6], %4 {strides = array<i32>} : memref<8x256xf32, #tpu.memory_space<vmem>>, vector<8x256xf32>,
    %6 = arith.mulf %0, %1 : vector<8x256xf32>
    %c0_7 = arith.constant 0 : index
    %c0_8 = arith.constant 0 : index
    %7 = vector.load %arg5[%c0_7, %c0_8] : memref<8x256xf32, #tpu.memory_space<vmem>>, vector<8x256xf32>
    tpu.vector_store %arg5[%c0_7, %c0_8], %6 {strides = array<i32>} : memref<8x256xf32, #tpu.memory_space<vmem>>, vector<8x256xf32>,
    %cst = arith.constant 9.99999993E-9 : f32
    %8 = vector.broadcast %cst : f32 to vector<8x256xf32>
    %9 = arith.addf %1, %8 : vector<8x256xf32>
    %10 = arith.divf %0, %9 : vector<8x256xf32>
    %c0_9 = arith.constant 0 : index
    %c0_10 = arith.constant 0 : index
    %11 = vector.load %arg6[%c0_9, %c0_10] : memref<8x256xf32, #tpu.memory_space<vmem>>, vector<8x256xf32>
    tpu.vector_store %arg6[%c0_9, %c0_10], %10 {strides = array<i32>} : memref<8x256xf32, #tpu.memory_space<vmem>>, vector<8x256xf32>,
    %12 = arith.cmpf ogt, %0, %1 : vector<8x256xf32>
    %13 = arith.extui %12 : vector<8x256xi1> to vector<8x256xi8>
    %c0_11 = arith.constant 0 : index
    %c0_12 = arith.constant 0 : index
    %14 = vector.load %arg7[%c0_11, %c0_12] : memref<8x256xi8, #tpu.memory_space<vmem>>, vector<8x256xi8>
    tpu.vector_store %arg7[%c0_11, %c0_12], %13 {strides = array<i32>} : memref<8x256xi8, #tpu.memory_space<vmem>>, vector<8x256xi8>,
    return
  }
  func.func @transform_0(%arg0: i32) -> (i32, i32) {
    %c0_i32 = arith.constant 0 : i32
    %c0_i32_0 = arith.constant 0 : i32
    return %arg0, %c0_i32 : i32, i32
  }
  func.func @transform_1(%arg0: i32) -> (i32, i32) {
    %c0_i32 = arith.constant 0 : i32
    %c0_i32_0 = arith.constant 0 : i32
    return %arg0, %c0_i32 : i32, i32
  }
  func.func @transform_2(%arg0: i32) -> (i32, i32) {
    %c0_i32 = arith.constant 0 : i32
    %c0_i32_0 = arith.constant 0 : i32
    return %arg0, %c0_i32 : i32, i32
  }
  func.func @transform_3(%arg0: i32) -> (i32, i32) {
    %c0_i32 = arith.constant 0 : i32
    %c0_i32_0 = arith.constant 0 : i32
    return %arg0, %c0_i32 : i32, i32
  }
  func.func @transform_4(%arg0: i32) -> (i32, i32) {
    %c0_i32 = arith.constant 0 : i32
    %c0_i32_0 = arith.constant 0 : i32
    return %arg0, %c0_i32 : i32, i32
  }
  func.func @transform_5(%arg0: i32) -> (i32, i32) {
    %c0_i32 = arith.constant 0 : i32
    %c0_i32_0 = arith.constant 0 : i32
    return %arg0, %c0_i32 : i32, i32
  }
  func.func @transform_6(%arg0: i32) -> (i32, i32) {
    %c0_i32 = arith.constant 0 : i32
    %c0_i32_0 = arith.constant 0 : i32
    return %arg0, %c0_i32 : i32, i32
  }
}

</mosaic_0001>

<llo_original>
// kernel: _forward.1
$region0: #{_forward.1}
  #allocation0 [shape = 'u32[]', space=smem, size = 0x4, offset = 0x4, fixed_abs, tag = 'smem constant byte address 0x4 - core index']
  #allocation1 [shape = 'u32[144,128]{1,0:T(1,128)}', space=vmem, size = 0x12000, scoped, tag = 'internal scratch']
  %s0 = inlined_call_operand.vmem [shape: f32[8,256], index: 0, kind: input, shape index: {}]
  %s1 = inlined_call_operand.vmem [shape: f32[8,256], index: 1, kind: input, shape index: {}]
  %s2 = inlined_call_operand.vmem [shape: f32[8,256], index: 2, kind: output, shape index: {0}]
  %s3 = inlined_call_operand.vmem [shape: f32[8,256], index: 3, kind: output, shape index: {1}]
  %s4 = inlined_call_operand.vmem [shape: f32[8,256], index: 4, kind: output, shape index: {2}]
  %s5 = inlined_call_operand.vmem [shape: f32[8,256], index: 5, kind: output, shape index: {3}]
  %s6 = inlined_call_operand.vmem [shape: s32[8,256], index: 6, kind: output, shape index: {4}]
  %7 = xla_tuple %s2, %s3, %s4, %s5, %s6
  %s8 = sld [smem:[#allocation0]]
  $region50: #{_forward.1} parent=0
    _
  %s10 = ssub.s32 1, %s8
  %s11 = scalar_select 0, %s10, %s8
  // Predicated region
  $region2: #{_forward.1} parent=0 // pred_check
    _
  $region3: #{_forward.1} parent=0 // pred_check_branch
    %13 = sbr.rel (0) target = $region5
  $region4: #{_forward.1} parent=0 // pred_region
    _
  $region5: #{_forward.1} parent=0 // pred_fallthru
    _
  // Predicated region
  $region6: #{_forward.1} parent=0 // pred_check
    _
  $region7: #{_forward.1} parent=0 // pred_check_branch
    %15 = sbr.rel (0) target = $region9
  $region8: #{_forward.1} parent=0 // pred_region
    _
  $region9: #{_forward.1} parent=0 // pred_fallthru
    _
  %v16 = vld [vmem:[%s0] sm:$0xff]
  %v17 = vld [vmem:[%s0 + $0x8] sm:$0xff]
  %v18 = vld [vmem:[%s1] sm:$0xff]
  %v19 = vld [vmem:[%s1 + $0x8] sm:$0xff]
  %v20 = vadd.f32 %v16, %v18
  %v21 = vadd.f32 %v17, %v19
  %22 = vst [vmem:[%s2] sm:$0xff] %v20
  %23 = vst [vmem:[%s2 + $0x8] sm:$0xff] %v21
  %v24 = vsub.f32 %v16, %v18
  %v25 = vsub.f32 %v17, %v19
  %26 = vst [vmem:[%s3] sm:$0xff] %v24
  %27 = vst [vmem:[%s3 + $0x8] sm:$0xff] %v25
  %v28 = vmul.f32 %v16, %v18
  %v29 = vmul.f32 %v17, %v19
  %30 = vst [vmem:[%s4] sm:$0xff] %v28
  %31 = vst [vmem:[%s4 + $0x8] sm:$0xff] %v29
  %v32 = vadd.f32 %v18, 1e-08
  %v33 = vadd.f32 %v19, 1e-08
  %v34 = vrcp.pop %v32
  %v35 = vmul.f32 %v16, %v34
  %v36 = vrcp.pop %v33
  %v37 = vmul.f32 %v17, %v36
  %38 = vst [vmem:[%s5] sm:$0xff] %v35
  %39 = vst [vmem:[%s5 + $0x8] sm:$0xff] %v37
  %vm40 = vcmp.gt.f32.partialorder %v16, %v18
  %vm41 = vcmp.gt.f32.partialorder %v17, %v19
  %v42 = vsel %vm40, 1, 0
  %v43 = vsel %vm41, 1, 0
  %44 = vst [vmem:[%s6] sm:$0xff] %v42
  %45 = vst [vmem:[%s6 + $0x8] sm:$0xff] %v43
  // Predicated region
  $region10: #{_forward.1} parent=0 // pred_check
    _
  $region11: #{_forward.1} parent=0 // pred_check_branch
    %47 = sbr.rel (0) target = $region13
  $region12: #{_forward.1} parent=0 // pred_region
    _
  $region13: #{_forward.1} parent=0 // pred_fallthru
    _
  // Predicated region
  $region14: #{_forward.1} parent=0 // pred_check
    _
  $region15: #{_forward.1} parent=0 // pred_check_branch
    %49 = sbr.rel (0) target = $region17
  $region16: #{_forward.1} parent=0 // pred_region
    _
  $region17: #{_forward.1} parent=0 // pred_fallthru
    _
  // Predicated region
  $region18: #{_forward.1} parent=0 // pred_check
    _
  $region19: #{_forward.1} parent=0 // pred_check_branch
    %51 = sbr.rel (0) target = $region21
  $region20: #{_forward.1} parent=0 // pred_region
    _
  $region21: #{_forward.1} parent=0 // pred_fallthru
    _
  // Predicated region
  $region22: #{_forward.1} parent=0 // pred_check
    _
  $region23: #{_forward.1} parent=0 // pred_check_branch
    %53 = sbr.rel (0) target = $region25
  $region24: #{_forward.1} parent=0 // pred_region
    _
  $region25: #{_forward.1} parent=0 // pred_fallthru
    _
  // Predicated region
  $region26: #{_forward.1} parent=0 // pred_check
    _
  $region27: #{_forward.1} parent=0 // pred_check_branch
    %55 = sbr.rel (0) target = $region29
  $region28: #{_forward.1} parent=0 // pred_region
    _
  $region29: #{_forward.1} parent=0 // pred_fallthru
    _
  // Predicated region
  $region30: #{_forward.1} parent=0 // pred_check
    _
  $region31: #{_forward.1} parent=0 // pred_check_branch
    %57 = sbr.rel (0) target = $region33
  $region32: #{_forward.1} parent=0 // pred_region
    _
  $region33: #{_forward.1} parent=0 // pred_fallthru
    _
  // Predicated region
  $region34: #{_forward.1} parent=0 // pred_check
    _
  $region35: #{_forward.1} parent=0 // pred_check_branch
    %59 = sbr.rel (0) target = $region37
  $region36: #{_forward.1} parent=0 // pred_region
    _
  $region37: #{_forward.1} parent=0 // pred_fallthru
    _
  // Predicated region
  $region38: #{_forward.1} parent=0 // pred_check
    _
  $region39: #{_forward.1} parent=0 // pred_check_branch
    %61 = sbr.rel (0) target = $region41
  $region40: #{_forward.1} parent=0 // pred_region
    _
  $region41: #{_forward.1} parent=0 // pred_fallthru
    _
  // Predicated region
  $region42: #{_forward.1} parent=0 // pred_check
    _
  $region43: #{_forward.1} parent=0 // pred_check_branch
    %63 = sbr.rel (0) target = $region45
  $region44: #{_forward.1} parent=0 // pred_region
    _
  $region45: #{_forward.1} parent=0 // pred_fallthru
    _
  // Predicated region
  $region46: #{_forward.1} parent=0 // pred_check
    _
  $region47: #{_forward.1} parent=0 // pred_check_branch
    %65 = sbr.rel (0) target = $region49
  $region48: #{_forward.1} parent=0 // pred_region
    _
  $region49: #{_forward.1} parent=0 // pred_fallthru
    _

// kernel: _forward.1
$region0: #{_forward.1}
  #allocation0 [shape = 'u32[]', space=smem, size = 0x4, offset = 0x4, fixed_abs, tag = 'smem constant byte address 0x4 - core index']
  #allocation1 [shape = 'u32[144,128]{1,0:T(1,128)}', space=vmem, size = 0x12000, scoped, tag = 'internal scratch']
  %s0 = inlined_call_operand.vmem [shape: f32[8,256], index: 0, kind: input, shape index: {}]
  %s1 = inlined_call_operand.vmem [shape: f32[8,256], index: 1, kind: input, shape index: {}]
  %s2 = inlined_call_operand.vmem [shape: f32[8,256], index: 2, kind: output, shape index: {0}]
  %s3 = inlined_call_operand.vmem [shape: f32[8,256], index: 3, kind: output, shape index: {1}]
  %s4 = inlined_call_operand.vmem [shape: f32[8,256], index: 4, kind: output, shape index: {2}]
  %s5 = inlined_call_operand.vmem [shape: f32[8,256], index: 5, kind: output, shape index: {3}]
  %s6 = inlined_call_operand.vmem [shape: s8[8,256], index: 6, kind: output, shape index: {4}]
  %7 = xla_tuple %s2, %s3, %s4, %s5, %s6
  %s8 = sld [smem:[#allocation0]]
  $region50: #{_forward.1} parent=0
    _
  %s10 = ssub.s32 1, %s8
  %s11 = scalar_select 0, %s10, %s8
  // Predicated region
  $region2: #{_forward.1} parent=0 // pred_check
    _
  $region3: #{_forward.1} parent=0 // pred_check_branch
    %13 = sbr.rel (0) target = $region5
  $region4: #{_forward.1} parent=0 // pred_region
    _
  $region5: #{_forward.1} parent=0 // pred_fallthru
    _
  // Predicated region
  $region6: #{_forward.1} parent=0 // pred_check
    _
  $region7: #{_forward.1} parent=0 // pred_check_branch
    %15 = sbr.rel (0) target = $region9
  $region8: #{_forward.1} parent=0 // pred_region
    _
  $region9: #{_forward.1} parent=0 // pred_fallthru
    _
  %v18 = vld [vmem:[%s0] sm:$0xff]
  %v19 = vld [vmem:[%s0 + $0x8] sm:$0xff]
  %v20 = vld [vmem:[%s1] sm:$0xff]
  %v21 = vld [vmem:[%s1 + $0x8] sm:$0xff]
  %v22 = vadd.f32 %v18, %v20
  %v23 = vadd.f32 %v19, %v21
  %24 = vst [vmem:[%s2] sm:$0xff] %v22
  %25 = vst [vmem:[%s2 + $0x8] sm:$0xff] %v23
  %v26 = vsub.f32 %v18, %v20
  %v27 = vsub.f32 %v19, %v21
  %28 = vst [vmem:[%s3] sm:$0xff] %v26
  %29 = vst [vmem:[%s3 + $0x8] sm:$0xff] %v27
  %v30 = vmul.f32 %v18, %v20
  %v31 = vmul.f32 %v19, %v21
  %32 = vst [vmem:[%s4] sm:$0xff] %v30
  %33 = vst [vmem:[%s4 + $0x8] sm:$0xff] %v31
  %v34 = vadd.f32 %v20, 1e-08
  %v35 = vadd.f32 %v21, 1e-08
  %v36 = vrcp.pop %v34
  %v37 = vmul.f32 %v18, %v36
  %v38 = vrcp.pop %v35
  %v39 = vmul.f32 %v19, %v38
  %40 = vst [vmem:[%s5] sm:$0xff] %v37
  %41 = vst [vmem:[%s5 + $0x8] sm:$0xff] %v39
  %vm42 = vcmp.gt.f32.partialorder %v18, %v20
  %vm43 = vcmp.gt.f32.partialorder %v19, %v21
  %vm44 = vmpackc.low %vm42, %vm42
  %vm45 = vmpackc.even %vm44, %vm44
  %vm46 = vmpackc.low %vm43, %vm43
  %vm47 = vmpackc.even %vm46, %vm46
  %v48 = vsel %vm45, 16843009, 0
  %v49 = vsel %vm47, 16843009, 0
  %v50 = vunpack.c.0.s8 %v48
  %v51 = vunpack.c.0.s8 %v49
  %v52 = vpack.c.b16 %v51, %v50
  %v53 = vpack.c.b8 %v52, %v52
  %54 = vst [vmem:[%s6] sm:$0xf] %v53
  // Predicated region
  $region10: #{_forward.1} parent=0 // pred_check
    _
  $region11: #{_forward.1} parent=0 // pred_check_branch
    %56 = sbr.rel (0) target = $region13
  $region12: #{_forward.1} parent=0 // pred_region
    _
  $region13: #{_forward.1} parent=0 // pred_fallthru
    _
  // Predicated region
  $region14: #{_forward.1} parent=0 // pred_check
    _
  $region15: #{_forward.1} parent=0 // pred_check_branch
    %58 = sbr.rel (0) target = $region17
  $region16: #{_forward.1} parent=0 // pred_region
    _
  $region17: #{_forward.1} parent=0 // pred_fallthru
    _
  // Predicated region
  $region18: #{_forward.1} parent=0 // pred_check
    _
  $region19: #{_forward.1} parent=0 // pred_check_branch
    %60 = sbr.rel (0) target = $region21
  $region20: #{_forward.1} parent=0 // pred_region
    _
  $region21: #{_forward.1} parent=0 // pred_fallthru
    _
  // Predicated region
  $region22: #{_forward.1} parent=0 // pred_check
    _
  $region23: #{_forward.1} parent=0 // pred_check_branch
    %62 = sbr.rel (0) target = $region25
  $region24: #{_forward.1} parent=0 // pred_region
    _
  $region25: #{_forward.1} parent=0 // pred_fallthru
    _
  // Predicated region
  $region26: #{_forward.1} parent=0 // pred_check
    _
  $region27: #{_forward.1} parent=0 // pred_check_branch
    %64 = sbr.rel (0) target = $region29
  $region28: #{_forward.1} parent=0 // pred_region
    _
  $region29: #{_forward.1} parent=0 // pred_fallthru
    _
  // Predicated region
  $region30: #{_forward.1} parent=0 // pred_check
    _
  $region31: #{_forward.1} parent=0 // pred_check_branch
    %66 = sbr.rel (0) target = $region33
  $region32: #{_forward.1} parent=0 // pred_region
    _
  $region33: #{_forward.1} parent=0 // pred_fallthru
    _
  // Predicated region
  $region34: #{_forward.1} parent=0 // pred_check
    _
  $region35: #{_forward.1} parent=0 // pred_check_branch
    %68 = sbr.rel (0) target = $region37
  $region36: #{_forward.1} parent=0 // pred_region
    _
  $region37: #{_forward.1} parent=0 // pred_fallthru
    _
  // Predicated region
  $region38: #{_forward.1} parent=0 // pred_check
    _
  $region39: #{_forward.1} parent=0 // pred_check_branch
    %70 = sbr.rel (0) target = $region41
  $region40: #{_forward.1} parent=0 // pred_region
    _
  $region41: #{_forward.1} parent=0 // pred_fallthru
    _
  // Predicated region
  $region42: #{_forward.1} parent=0 // pred_check
    _
  $region43: #{_forward.1} parent=0 // pred_check_branch
    %72 = sbr.rel (0) target = $region45
  $region44: #{_forward.1} parent=0 // pred_region
    _
  $region45: #{_forward.1} parent=0 // pred_fallthru
    _
  // Predicated region
  $region46: #{_forward.1} parent=0 // pred_check
    _
  $region47: #{_forward.1} parent=0 // pred_check_branch
    %74 = sbr.rel (0) target = $region49
  $region48: #{_forward.1} parent=0 // pred_region
    _
  $region49: #{_forward.1} parent=0 // pred_fallthru
    _

</llo_original>
